<compile_context>
chip_gen: v7x
topology: tpu7x:2x2x1
jax: 0.10.0
libtpu: 0.0.40
codegen_flags: <defaults>
</compile_context>

<pallas_src>
import jax
import jax.numpy as jnp
from jax.experimental import pallas as pl
from jax.experimental.pallas import tpu as pltpu

_PIX = 128                            # pixels per block row (output lane width)
_MAX_BLOCK_BYTES = 2 * 1024 * 1024    # <= 2 MiB per input block (v7x-safe)
_THRESHOLD = 0.7


def _round_up(x, m):
    return ((x + m - 1) // m) * m


def _rbr_kernel(x_ref, mask_ref):
    # x_ref:    (row_tile, 128*C) f32, raw channel-interleaved pixel data
    # mask_ref: (row_tile, 128)   bool, one entry per pixel
    lane_w = x_ref.shape[-1]
    npix = mask_ref.shape[-1]
    nch = lane_w // npix              # channel stride along the lane axis

    x = x_ref[...]
    r = x[:, : lane_w - 2]            # R sits at lanes nch*j
    b = x[:, 2:]                      # same-pixel B (channel 2), aligned under R
    rbr = r / b                       # exact f32 divide (torch semantics, incl. B==0)
    m01 = jnp.where(rbr > _THRESHOLD, 1.0, 0.0).astype(jnp.bfloat16)

    # Compact the R lanes (nch*j) down to 128 pixel lanes with a 0/1 selection
    # matmul on the idle MXU.  Exact because every operand is 0 or 1.
    k = jax.lax.broadcasted_iota(jnp.int32, (lane_w - 2, npix), 0)
    j = jax.lax.broadcasted_iota(jnp.int32, (lane_w - 2, npix), 1)
    sel = jnp.where(k == nch * j, 1.0, 0.0).astype(jnp.bfloat16)
    picked = jnp.dot(m01, sel, preferred_element_type=jnp.float32)
    mask_ref[...] = picked > 0.5


def rbr_model_forward(img):
    """img: (N, H, W, C) float32, channels-last, C >= 3. Returns bool (N, H, W)."""
    n, h, w, c = img.shape
    assert c >= 3, "needs R (channel 0) and B (channel 2)"
    p = n * h * w                     # number of pixels
    lane_w = _PIX * c                 # interleaved elements per block row
    rows = pl.cdiv(p, _PIX)

    flat = img.reshape(-1)            # no-copy view of the contiguous NHWC slab
    if rows * _PIX != p:
        # Rare ragged tail: one small pad pass (B padded with 1.0 stays finite).
        flat = jnp.pad(flat, (0, rows * lane_w - flat.shape[0]),
                       constant_values=1.0)
    x2d = flat.reshape(rows, lane_w)  # still a no-copy reshape

    # Tiling: <= 2 MiB f32 input blocks, row_tile a multiple of 32 (packed bool
    # output rows stay aligned), >= ~4 grid steps when the input is large
    # enough (v7x megacore sharding + pipelining). No padding on the row axis:
    # the ragged last block is masked by Pallas.
    max_tile = max(32, (_MAX_BLOCK_BYTES // (lane_w * 4)) // 32 * 32)
    row_tile = min(max_tile, _round_up(pl.cdiv(rows, 4), 32))
    if row_tile > rows:
        row_tile = rows               # tiny input: one block spanning the array
    grid = (pl.cdiv(rows, row_tile),)

    mask2d = pl.pallas_call(
        _rbr_kernel,
        out_shape=jax.ShapeDtypeStruct((rows, _PIX), jnp.bool_),
        grid_spec=pltpu.PrefetchScalarGridSpec(
            num_scalar_prefetch=0,
            grid=grid,
            in_specs=[pl.BlockSpec((row_tile, lane_w), lambda i: (i, 0))],
            out_specs=pl.BlockSpec((row_tile, _PIX), lambda i: (i, 0)),
        ),
        compiler_params=pltpu.CompilerParams(
            dimension_semantics=("parallel",),
            vmem_limit_bytes=32 * 1024 * 1024,   # actual use ~<= 12 MiB incl. temps
        ),
    )(x2d)

    if rows * _PIX == p:
        return mask2d.reshape(n, h, w)           # free reshape, no extra pass
    return mask2d.reshape(-1)[:p].reshape(n, h, w)


if __name__ == "__main__":
    key = jax.random.PRNGKey(0)
    # Small NHWC image batch: batch=2, 16x16 spatial, 4 channels (RGBA-like).
    N, H, W, C = 2, 16, 16, 4
    img = jax.random.uniform(
        key, (N, H, W, C), dtype=jnp.float32, minval=0.1, maxval=1.0
    )

    mask = rbr_model_forward(img)
    mask = jax.block_until_ready(mask)

    # Reference check in plain JAX (same math as the PyTorch forward).
    ref = (img[:, :, :, 0] / img[:, :, :, 2]) > 0.7
    assert mask.shape == (N, H, W)
    assert mask.dtype == jnp.bool_
    assert bool(jnp.all(mask == ref))

    print("KERNEL_OK")
</pallas_src>

<mosaic_0001>
module attributes {stable_mosaic.version = 11 : i64} {
  func.func @_rbr_kernel(%arg0: i32, %arg1: memref<4x512xf32, #tpu.memory_space<vmem>>, %arg2: memref<4x128xi32, #tpu.memory_space<vmem>>) attributes {dimension_semantics = [#tpu.dimension_semantics<parallel>], iteration_bounds = array<i64: 1>, scalar_prefetch = 0 : i64, scratch_operands = 0 : i64, tpu.core_type = #tpu.core_type<tc>, window_params = [{transform_indices = @transform_0, window_bounds = array<i64: 4, 512>}, {transform_indices = @transform_1, window_bounds = array<i64: 4, 128>}]} {
    %c0 = arith.constant 0 : index
    %c0_0 = arith.constant 0 : index
    %0 = vector.load %arg1[%c0, %c0_0] : memref<4x512xf32, #tpu.memory_space<vmem>>, vector<4x512xf32>
    %1 = vector.extract_strided_slice %0 {offsets = [0, 0], sizes = [4, 510], strides = [1, 1]} : vector<4x512xf32> to vector<4x510xf32>
    %2 = vector.extract_strided_slice %0 {offsets = [0, 2], sizes = [4, 510], strides = [1, 1]} : vector<4x512xf32> to vector<4x510xf32>
    %3 = arith.divf %1, %2 : vector<4x510xf32>
    %cst = arith.constant 0.699999988 : f32
    %4 = vector.broadcast %cst : f32 to vector<4x510xf32>
    %5 = arith.cmpf ogt, %3, %4 : vector<4x510xf32>
    %cst_1 = arith.constant 1.000000e+00 : f32
    %cst_2 = arith.constant 0.000000e+00 : f32
    %6 = vector.broadcast %cst_1 : f32 to vector<4x510xf32>
    %7 = vector.broadcast %cst_2 : f32 to vector<4x510xf32>
    %8 = arith.select %5, %6, %7 : vector<4x510xi1>, vector<4x510xf32>
    %9 = arith.truncf %8 : vector<4x510xf32> to vector<4x510xbf16>
    %10 = tpu.iota {dimensions = array<i32: 0>} : vector<510x128xi32>
    %11 = tpu.iota {dimensions = array<i32: 1>} : vector<510x128xi32>
    %c4_i32 = arith.constant 4 : i32
    %12 = vector.broadcast %c4_i32 : i32 to vector<510x128xi32>
    %13 = arith.muli %12, %11 : vector<510x128xi32>
    %14 = arith.cmpi eq, %10, %13 : vector<510x128xi32>
    %cst_3 = arith.constant 1.000000e+00 : f32
    %cst_4 = arith.constant 0.000000e+00 : f32
    %15 = vector.broadcast %cst_3 : f32 to vector<510x128xf32>
    %16 = vector.broadcast %cst_4 : f32 to vector<510x128xf32>
    %17 = arith.select %14, %15, %16 : vector<510x128xi1>, vector<510x128xf32>
    %18 = arith.truncf %17 : vector<510x128xf32> to vector<510x128xbf16>
    %cst_5 = arith.constant dense<0.000000e+00> : vector<4x128xf32>
    %19 = tpu.matmul %9, %18, %cst_5 {dimension_numbers = #tpu.dot_dimension_numbers<[1], [0], [0], [1], [0, 0, 1, 1], [], []>} : vector<4x510xbf16>, vector<510x128xbf16>, vector<4x128xf32> -> vector<4x128xf32>
    %cst_6 = arith.constant 5.000000e-01 : f32
    %20 = vector.broadcast %cst_6 : f32 to vector<4x128xf32>
    %21 = arith.cmpf ogt, %19, %20 : vector<4x128xf32>
    %c0_7 = arith.constant 0 : index
    %c0_8 = arith.constant 0 : index
    %22 = vector.load %arg2[%c0_7, %c0_8] : memref<4x128xi32, #tpu.memory_space<vmem>>, vector<4x128xi32>
    %23 = arith.extui %21 : vector<4x128xi1> to vector<4x128xi32>
    %cst_9 = arith.constant dense<0> : vector<4x128xi32>
    %24 = arith.cmpi ne, %22, %cst_9 : vector<4x128xi32>
    tpu.vector_store %arg2[%c0_7, %c0_8], %23 {strides = array<i32>} : memref<4x128xi32, #tpu.memory_space<vmem>>, vector<4x128xi32>,
    return
  }
  func.func @transform_0(%arg0: i32) -> (i32, i32) {
    %c0_i32 = arith.constant 0 : i32
    %c0_i32_0 = arith.constant 0 : i32
    return %arg0, %c0_i32 : i32, i32
  }
  func.func @transform_1(%arg0: i32) -> (i32, i32) {
    %c0_i32 = arith.constant 0 : i32
    %c0_i32_0 = arith.constant 0 : i32
    return %arg0, %c0_i32 : i32, i32
  }
}

</mosaic_0001>

<llo_original>
// kernel: tpu_custom_call.1
$region0: #{tpu_custom_call.1}
  #allocation0 [shape = 'u32[]', space=smem, size = 0x4, offset = 0x4, fixed_abs, tag = 'smem constant byte address 0x4 - core index']
  #allocation1 [shape = 'u32[144,128]{1,0:T(1,128)}', space=vmem, size = 0x12000, scoped, tag = 'internal scratch']
  %s0 = inlined_call_operand.hbm [shape: f32[4,512], index: 0, kind: input, shape index: {}]
  %s1 = inlined_call_operand.vmem [shape: s32[4,128], index: 1, kind: output, shape index: {}]
  %s2 = sld [smem:[#allocation0]]
  $region18: #{tpu_custom_call.1} parent=0
    _
  %s4 = ssub.s32 1, %s2
  %s5 = scalar_select 0, %s4, %s2
  $region1: #{tpu_custom_call.1} parent=0
    #allocation2 [shape = 'u8[8192]{0}', space=vmem, size = 0x2000, scoped, tag = 'input window, operand 0, single buffered']
    #allocation3 [shape = 's32[1]{0}', space=sflag, size = 0x4, scoped, tag = 'scoped memory for tpu_custom_call.1']
    %6 = vsyncpa [#allocation3], 0
    // Predicated region
    $region2: #{tpu_custom_call.1} parent=1 // pred_check
      _
    $region3: #{tpu_custom_call.1} parent=1 // pred_check_branch
      %8 = sbr.rel (0) target = $region5
    $region4: #{tpu_custom_call.1} parent=1 // pred_region
      %s10 = ssub.s32 256, 256
      %11 = vsyncadd [#allocation3], %s10
      %s13 = sshll.u32 [#allocation2], 4
      %s14 = int_to_ptr.vmem [resolvable:$true] %s13
      %16 = dma.hbm_to_vmem [thread:$0]  %s0, 256, %s14, [#allocation3]
    $region5: #{tpu_custom_call.1} parent=1 // pred_fallthru
      _
    // Predicated region
    $region6: #{tpu_custom_call.1} parent=1 // pred_check
      _
    $region7: #{tpu_custom_call.1} parent=1 // pred_check_branch
      %18 = sbr.rel (0) target = $region9
    $region8: #{tpu_custom_call.1} parent=1 // pred_region
      %19 = dma.done [#allocation3], 256
    $region9: #{tpu_custom_call.1} parent=1 // pred_fallthru
      _
    %v21 = vld [vmem:[#allocation2] sm:$0xff]
    %v22 = vld [vmem:[#allocation2 + $0x8] sm:$0xff]
    %25 = vrot.lane.b32.xlu0 %v21, 126
    %v26 = vpop.permute.xlu0 %25
    %27 = vrot.lane.b32.xlu0 %v22, 126
    %v28 = vpop.permute.xlu0 %27
    %v29 = vrot.slane %v26, 4
    %v30 = vrot.slane %v28, 4
    %vm31 = vcmask 1043456
    %v32 = vsel %vm31, %v29, %v30
    %vm33 = vcmask 1031168
    %v34 = vsel %vm33, %v26, %v32
    %v35 = vsel %vm33, %v28, %v30
    %v38 = vrcp.pop %v34
    %v39 = vmul.f32 %v21, %v38
    %v40 = vrcp.pop %v35
    %v41 = vmul.f32 %v22, %v40
    %vm42 = vcmp.gt.f32.partialorder %v39, 0.7
    %vm43 = vcmp.gt.f32.partialorder %v41, 0.7
    %v44 = vsel %vm42, 1.0, 0.0
    %v45 = vsel %vm43, 1.0, 0.0
    %v48 = vcombine.high %v44, %v44
    %v49 = vcombine.high %v45, %v45
    %v52 = vpack.c.bf16 %v44, %v44
    %v53 = vpack.c.bf16 %v48, %v48
    %v54 = vpack.c.bf16 %v45, %v45
    %v55 = vpack.c.bf16 %v49, %v49
    %v56 = vlaneseq
    %v57 = vshrl.u32 %v56, 7
    %v58 = vadd.s32 %v57, 8
    %v59 = vadd.s32 %v57, 16
    %v60 = vadd.s32 %v57, 24
    %v61 = vadd.s32 %v57, 32
    %v62 = vadd.s32 %v57, 40
    %v63 = vadd.s32 %v57, 48
    %v64 = vadd.s32 %v57, 56
    %v65 = vadd.s32 %v57, 64
    %v66 = vadd.s32 %v57, 72
    %v67 = vadd.s32 %v57, 80
    %v68 = vadd.s32 %v57, 88
    %v69 = vadd.s32 %v57, 96
    %v70 = vadd.s32 %v57, 104
    %v71 = vadd.s32 %v57, 112
    %v72 = vadd.s32 %v57, 120
    %v73 = vadd.s32 %v57, 128
    %v74 = vadd.s32 %v57, 136
    %v75 = vadd.s32 %v57, 144
    %v76 = vadd.s32 %v57, 152
    %v77 = vadd.s32 %v57, 160
    %v78 = vadd.s32 %v57, 168
    %v79 = vadd.s32 %v57, 176
    %v80 = vadd.s32 %v57, 184
    %v81 = vadd.s32 %v57, 192
    %v82 = vadd.s32 %v57, 200
    %v83 = vadd.s32 %v57, 208
    %v84 = vadd.s32 %v57, 216
    %v85 = vadd.s32 %v57, 224
    %v86 = vadd.s32 %v57, 232
    %v87 = vadd.s32 %v57, 240
    %v88 = vadd.s32 %v57, 248
    %v89 = vadd.s32 %v57, 256
    %v90 = vadd.s32 %v57, 264
    %v91 = vadd.s32 %v57, 272
    %v92 = vadd.s32 %v57, 280
    %v93 = vadd.s32 %v57, 288
    %v94 = vadd.s32 %v57, 296
    %v95 = vadd.s32 %v57, 304
    %v96 = vadd.s32 %v57, 312
    %v97 = vadd.s32 %v57, 320
    %v98 = vadd.s32 %v57, 328
    %v99 = vadd.s32 %v57, 336
    %v100 = vadd.s32 %v57, 344
    %v101 = vadd.s32 %v57, 352
    %v102 = vadd.s32 %v57, 360
    %v103 = vadd.s32 %v57, 368
    %v104 = vadd.s32 %v57, 376
    %v105 = vadd.s32 %v57, 384
    %v106 = vadd.s32 %v57, 392
    %v107 = vadd.s32 %v57, 400
    %v108 = vadd.s32 %v57, 408
    %v109 = vadd.s32 %v57, 416
    %v110 = vadd.s32 %v57, 424
    %v111 = vadd.s32 %v57, 432
    %v112 = vadd.s32 %v57, 440
    %v113 = vadd.s32 %v57, 448
    %v114 = vadd.s32 %v57, 456
    %v115 = vadd.s32 %v57, 464
    %v116 = vadd.s32 %v57, 472
    %v117 = vadd.s32 %v57, 480
    %v118 = vadd.s32 %v57, 488
    %v119 = vadd.s32 %v57, 496
    %v120 = vadd.s32 %v57, 504
    %v121 = vlaneseq
    %v122 = vand.u32 %v121, 127
    %v123 = vmul.u32 %v122, 4
    %vm124 = vcmp.eq.s32.totalorder %v57, %v123
    %vm125 = vcmp.eq.s32.totalorder %v58, %v123
    %vm126 = vcmp.eq.s32.totalorder %v59, %v123
    %vm127 = vcmp.eq.s32.totalorder %v60, %v123
    %vm128 = vcmp.eq.s32.totalorder %v61, %v123
    %vm129 = vcmp.eq.s32.totalorder %v62, %v123
    %vm130 = vcmp.eq.s32.totalorder %v63, %v123
    %vm131 = vcmp.eq.s32.totalorder %v64, %v123
    %vm132 = vcmp.eq.s32.totalorder %v65, %v123
    %vm133 = vcmp.eq.s32.totalorder %v66, %v123
    %vm134 = vcmp.eq.s32.totalorder %v67, %v123
    %vm135 = vcmp.eq.s32.totalorder %v68, %v123
    %vm136 = vcmp.eq.s32.totalorder %v69, %v123
    %vm137 = vcmp.eq.s32.totalorder %v70, %v123
    %vm138 = vcmp.eq.s32.totalorder %v71, %v123
    %vm139 = vcmp.eq.s32.totalorder %v72, %v123
    %vm140 = vcmp.eq.s32.totalorder %v73, %v123
    %vm141 = vcmp.eq.s32.totalorder %v74, %v123
    %vm142 = vcmp.eq.s32.totalorder %v75, %v123
    %vm143 = vcmp.eq.s32.totalorder %v76, %v123
    %vm144 = vcmp.eq.s32.totalorder %v77, %v123
    %vm145 = vcmp.eq.s32.totalorder %v78, %v123
    %vm146 = vcmp.eq.s32.totalorder %v79, %v123
    %vm147 = vcmp.eq.s32.totalorder %v80, %v123
    %vm148 = vcmp.eq.s32.totalorder %v81, %v123
    %vm149 = vcmp.eq.s32.totalorder %v82, %v123
    %vm150 = vcmp.eq.s32.totalorder %v83, %v123
    %vm151 = vcmp.eq.s32.totalorder %v84, %v123
    %vm152 = vcmp.eq.s32.totalorder %v85, %v123
    %vm153 = vcmp.eq.s32.totalorder %v86, %v123
    %vm154 = vcmp.eq.s32.totalorder %v87, %v123
    %vm155 = vcmp.eq.s32.totalorder %v88, %v123
    %vm156 = vcmp.eq.s32.totalorder %v89, %v123
    %vm157 = vcmp.eq.s32.totalorder %v90, %v123
    %vm158 = vcmp.eq.s32.totalorder %v91, %v123
    %vm159 = vcmp.eq.s32.totalorder %v92, %v123
    %vm160 = vcmp.eq.s32.totalorder %v93, %v123
    %vm161 = vcmp.eq.s32.totalorder %v94, %v123
    %vm162 = vcmp.eq.s32.totalorder %v95, %v123
    %vm163 = vcmp.eq.s32.totalorder %v96, %v123
    %vm164 = vcmp.eq.s32.totalorder %v97, %v123
    %vm165 = vcmp.eq.s32.totalorder %v98, %v123
    %vm166 = vcmp.eq.s32.totalorder %v99, %v123
    %vm167 = vcmp.eq.s32.totalorder %v100, %v123
    %vm168 = vcmp.eq.s32.totalorder %v101, %v123
    %vm169 = vcmp.eq.s32.totalorder %v102, %v123
    %vm170 = vcmp.eq.s32.totalorder %v103, %v123
    %vm171 = vcmp.eq.s32.totalorder %v104, %v123
    %vm172 = vcmp.eq.s32.totalorder %v105, %v123
    %vm173 = vcmp.eq.s32.totalorder %v106, %v123
    %vm174 = vcmp.eq.s32.totalorder %v107, %v123
    %vm175 = vcmp.eq.s32.totalorder %v108, %v123
    %vm176 = vcmp.eq.s32.totalorder %v109, %v123
    %vm177 = vcmp.eq.s32.totalorder %v110, %v123
    %vm178 = vcmp.eq.s32.totalorder %v111, %v123
    %vm179 = vcmp.eq.s32.totalorder %v112, %v123
    %vm180 = vcmp.eq.s32.totalorder %v113, %v123
    %vm181 = vcmp.eq.s32.totalorder %v114, %v123
    %vm182 = vcmp.eq.s32.totalorder %v115, %v123
    %vm183 = vcmp.eq.s32.totalorder %v116, %v123
    %vm184 = vcmp.eq.s32.totalorder %v117, %v123
    %vm185 = vcmp.eq.s32.totalorder %v118, %v123
    %vm186 = vcmp.eq.s32.totalorder %v119, %v123
    %vm187 = vcmp.eq.s32.totalorder %v120, %v123
    %v188 = vsel %vm124, 1.0, 0.0
    %v189 = vsel %vm125, 1.0, 0.0
    %v190 = vsel %vm126, 1.0, 0.0
    %v191 = vsel %vm127, 1.0, 0.0
    %v192 = vsel %vm128, 1.0, 0.0
    %v193 = vsel %vm129, 1.0, 0.0
    %v194 = vsel %vm130, 1.0, 0.0
    %v195 = vsel %vm131, 1.0, 0.0
    %v196 = vsel %vm132, 1.0, 0.0
    %v197 = vsel %vm133, 1.0, 0.0
    %v198 = vsel %vm134, 1.0, 0.0
    %v199 = vsel %vm135, 1.0, 0.0
    %v200 = vsel %vm136, 1.0, 0.0
    %v201 = vsel %vm137, 1.0, 0.0
    %v202 = vsel %vm138, 1.0, 0.0
    %v203 = vsel %vm139, 1.0, 0.0
    %v204 = vsel %vm140, 1.0, 0.0
    %v205 = vsel %vm141, 1.0, 0.0
    %v206 = vsel %vm142, 1.0, 0.0
    %v207 = vsel %vm143, 1.0, 0.0
    %v208 = vsel %vm144, 1.0, 0.0
    %v209 = vsel %vm145, 1.0, 0.0
    %v210 = vsel %vm146, 1.0, 0.0
    %v211 = vsel %vm147, 1.0, 0.0
    %v212 = vsel %vm148, 1.0, 0.0
    %v213 = vsel %vm149, 1.0, 0.0
    %v214 = vsel %vm150, 1.0, 0.0
    %v215 = vsel %vm151, 1.0, 0.0
    %v216 = vsel %vm152, 1.0, 0.0
    %v217 = vsel %vm153, 1.0, 0.0
    %v218 = vsel %vm154, 1.0, 0.0
    %v219 = vsel %vm155, 1.0, 0.0
    %v220 = vsel %vm156, 1.0, 0.0
    %v221 = vsel %vm157, 1.0, 0.0
    %v222 = vsel %vm158, 1.0, 0.0
    %v223 = vsel %vm159, 1.0, 0.0
    %v224 = vsel %vm160, 1.0, 0.0
    %v225 = vsel %vm161, 1.0, 0.0
    %v226 = vsel %vm162, 1.0, 0.0
    %v227 = vsel %vm163, 1.0, 0.0
    %v228 = vsel %vm164, 1.0, 0.0
    %v229 = vsel %vm165, 1.0, 0.0
    %v230 = vsel %vm166, 1.0, 0.0
    %v231 = vsel %vm167, 1.0, 0.0
    %v232 = vsel %vm168, 1.0, 0.0
    %v233 = vsel %vm169, 1.0, 0.0
    %v234 = vsel %vm170, 1.0, 0.0
    %v235 = vsel %vm171, 1.0, 0.0
    %v236 = vsel %vm172, 1.0, 0.0
    %v237 = vsel %vm173, 1.0, 0.0
    %v238 = vsel %vm174, 1.0, 0.0
    %v239 = vsel %vm175, 1.0, 0.0
    %v240 = vsel %vm176, 1.0, 0.0
    %v241 = vsel %vm177, 1.0, 0.0
    %v242 = vsel %vm178, 1.0, 0.0
    %v243 = vsel %vm179, 1.0, 0.0
    %v244 = vsel %vm180, 1.0, 0.0
    %v245 = vsel %vm181, 1.0, 0.0
    %v246 = vsel %vm182, 1.0, 0.0
    %v247 = vsel %vm183, 1.0, 0.0
    %v248 = vsel %vm184, 1.0, 0.0
    %v249 = vsel %vm185, 1.0, 0.0
    %v250 = vsel %vm186, 1.0, 0.0
    %v251 = vsel %vm187, 1.0, 0.0
    %v252 = vpack.c.bf16 %v189, %v188
    %v253 = vpack.c.bf16 %v191, %v190
    %v254 = vpack.c.bf16 %v193, %v192
    %v255 = vpack.c.bf16 %v195, %v194
    %v256 = vpack.c.bf16 %v197, %v196
    %v257 = vpack.c.bf16 %v199, %v198
    %v258 = vpack.c.bf16 %v201, %v200
    %v259 = vpack.c.bf16 %v203, %v202
    %v260 = vpack.c.bf16 %v205, %v204
    %v261 = vpack.c.bf16 %v207, %v206
    %v262 = vpack.c.bf16 %v209, %v208
    %v263 = vpack.c.bf16 %v211, %v210
    %v264 = vpack.c.bf16 %v213, %v212
    %v265 = vpack.c.bf16 %v215, %v214
    %v266 = vpack.c.bf16 %v217, %v216
    %v267 = vpack.c.bf16 %v219, %v218
    %v268 = vpack.c.bf16 %v221, %v220
    %v269 = vpack.c.bf16 %v223, %v222
    %v270 = vpack.c.bf16 %v225, %v224
    %v271 = vpack.c.bf16 %v227, %v226
    %v272 = vpack.c.bf16 %v229, %v228
    %v273 = vpack.c.bf16 %v231, %v230
    %v274 = vpack.c.bf16 %v233, %v232
    %v275 = vpack.c.bf16 %v235, %v234
    %v276 = vpack.c.bf16 %v237, %v236
    %v277 = vpack.c.bf16 %v239, %v238
    %v278 = vpack.c.bf16 %v241, %v240
    %v279 = vpack.c.bf16 %v243, %v242
    %v280 = vpack.c.bf16 %v245, %v244
    %v281 = vpack.c.bf16 %v247, %v246
    %v282 = vpack.c.bf16 %v249, %v248
    %v283 = vpack.c.bf16 %v251, %v250
    %v285 = vsel %vm33, %v55, 0
    %vm287 = vcmask 1046528
    %v289 = vsel %vm287, %v283, 0
    %291 = vmatprep.subr.bf16.mxu0 0
    %292 = vmatpush1.bf16.msra.mxu0 %v252
    %293 = vmatprep.subr.bf16.mxu0 0
    %294 = vmatpush1.bf16.msra.mxu0 %v253
    %295 = vmatprep.subr.bf16.mxu0 0
    %296 = vmatpush1.bf16.msra.mxu0 %v254
    %297 = vmatprep.subr.bf16.mxu0 0
    %298 = vmatpush1.bf16.msra.mxu0 %v255
    %299 = vmatprep.subr.bf16.mxu0 0
    %300 = vmatpush1.bf16.msra.mxu0 %v256
    %301 = vmatprep.subr.bf16.mxu0 0
    %302 = vmatpush1.bf16.msra.mxu0 %v257
    %303 = vmatprep.subr.bf16.mxu0 0
    %304 = vmatpush1.bf16.msra.mxu0 %v258
    %305 = vmatprep.subr.bf16.mxu0 0
    %306 = vmatpush1.bf16.msra.mxu0 %v259
    %307 = vmatprep.subr.bf16.mxu0 0
    %308 = vmatpush1.bf16.msra.mxu0 %v260
    %309 = vmatprep.subr.bf16.mxu0 0
    %310 = vmatpush1.bf16.msra.mxu0 %v261
    %311 = vmatprep.subr.bf16.mxu0 0
    %312 = vmatpush1.bf16.msra.mxu0 %v262
    %313 = vmatprep.subr.bf16.mxu0 0
    %314 = vmatpush1.bf16.msra.mxu0 %v263
    %315 = vmatprep.subr.bf16.mxu0 0
    %316 = vmatpush1.bf16.msra.mxu0 %v264
    %317 = vmatprep.subr.bf16.mxu0 0
    %318 = vmatpush1.bf16.msra.mxu0 %v265
    %319 = vmatprep.subr.bf16.mxu0 0
    %320 = vmatpush1.bf16.msra.mxu0 %v266
    %321 = vmatprep.subr.bf16.mxu0 0
    %322 = vmatpush1.bf16.msra.mxu0 %v267
    %323 = vmatprep.mubr.bf16.mxu0 %v53
    %324 = vmatmul.mubr.bf16.gmra.mrb[0].mxu0 %v52
    %v325 = vpop.f32.mrb[0].mxu0
    %v326 = vadd.f32 0.0, %v325
    %v327 = vpop.f32.mrb[0].mxu0
    %v328 = vpop.f32.mrb[0].mxu0
    %v329 = vpop.f32.mrb[0].mxu0
    %330 = vdwg.mxu0
    %331 = vmatprep.subr.bf16.mxu0 0
    %332 = vmatpush1.bf16.msra.mxu0 %v268
    %333 = vmatprep.subr.bf16.mxu0 0
    %334 = vmatpush1.bf16.msra.mxu0 %v269
    %335 = vmatprep.subr.bf16.mxu0 0
    %336 = vmatpush1.bf16.msra.mxu0 %v270
    %337 = vmatprep.subr.bf16.mxu0 0
    %338 = vmatpush1.bf16.msra.mxu0 %v271
    %339 = vmatprep.subr.bf16.mxu0 0
    %340 = vmatpush1.bf16.msra.mxu0 %v272
    %341 = vmatprep.subr.bf16.mxu0 0
    %342 = vmatpush1.bf16.msra.mxu0 %v273
    %343 = vmatprep.subr.bf16.mxu0 0
    %344 = vmatpush1.bf16.msra.mxu0 %v274
    %345 = vmatprep.subr.bf16.mxu0 0
    %346 = vmatpush1.bf16.msra.mxu0 %v275
    %347 = vmatprep.subr.bf16.mxu0 0
    %348 = vmatpush1.bf16.msra.mxu0 %v276
    %349 = vmatprep.subr.bf16.mxu0 0
    %350 = vmatpush1.bf16.msra.mxu0 %v277
    %351 = vmatprep.subr.bf16.mxu0 0
    %352 = vmatpush1.bf16.msra.mxu0 %v278
    %353 = vmatprep.subr.bf16.mxu0 0
    %354 = vmatpush1.bf16.msra.mxu0 %v279
    %355 = vmatprep.subr.bf16.mxu0 0
    %356 = vmatpush1.bf16.msra.mxu0 %v280
    %357 = vmatprep.subr.bf16.mxu0 0
    %358 = vmatpush1.bf16.msra.mxu0 %v281
    %359 = vmatprep.subr.bf16.mxu0 0
    %360 = vmatpush1.bf16.msra.mxu0 %v282
    %361 = vmatprep.subr.bf16.mxu0 0
    %362 = vmatpush1.bf16.msra.mxu0 %v289
    %363 = vmatprep.mubr.bf16.mxu0 %v285
    %364 = vmatmul.mubr.bf16.gmra.mrb[0].mxu0 %v54
    %v365 = vpop.f32.mrb[0].mxu0
    %v366 = vadd.f32 %v326, %v365
    %v367 = vpop.f32.mrb[0].mxu0
    %v368 = vpop.f32.mrb[0].mxu0
    %v369 = vpop.f32.mrb[0].mxu0
    %370 = vdwg.mxu0
    %vm371 = vcmp.gt.f32.partialorder %v366, 0.5
    %v372 = vsel %vm371, 1, 0
    %373 = vst [vmem:[%s1] sm:$0xf] %v372
    // Predicated region
    $region10: #{tpu_custom_call.1} parent=1 // pred_check
      _
    $region11: #{tpu_custom_call.1} parent=1 // pred_check_branch
      %375 = sbr.rel (0) target = $region13
    $region12: #{tpu_custom_call.1} parent=1 // pred_region
      _
    $region13: #{tpu_custom_call.1} parent=1 // pred_fallthru
      _
    // Predicated region
    $region14: #{tpu_custom_call.1} parent=1 // pred_check
      _
    $region15: #{tpu_custom_call.1} parent=1 // pred_check_branch
      %377 = sbr.rel (0) target = $region17
    $region16: #{tpu_custom_call.1} parent=1 // pred_region
      _
    $region17: #{tpu_custom_call.1} parent=1 // pred_fallthru
      _
    %378 = vsyncpa [#allocation3], 1

</llo_original>
